<compile_context>
chip_gen: v7x
topology: tpu7x:2x2x1
jax: 0.10.0
libtpu: 0.0.40
codegen_flags: <defaults>
</compile_context>

<pallas_src>
import functools

import jax
import jax.numpy as jnp
from jax import lax
from jax.experimental import pallas as pl
from jax.experimental.pallas import tpu as pltpu


def _round_up(n: int, m: int) -> int:
    return ((n + m - 1) // m) * m


def _vmem_capacity_bytes() -> int:
    try:
        info = pltpu.get_tpu_info()
        cap = int(getattr(info, "vmem_capacity_bytes", 0))
        if cap > 0:
            return cap
    except Exception:
        pass
    return 64 << 20  # conservative fallback (v7x per-TC VMEM)


def _select_tiles(B, Dp, Fp, in_isz, out_isz, budget):
    """Pick (TB, TF). Prefer weight residency (TF=Fp) first, then the largest
    batch tile TB that fits the VMEM budget with limited batch-padding waste."""
    base = Fp // 128
    # Multiples of 128 dividing Fp, descending (Fp first => weight residency).
    tf_cands = [128 * d for d in range(base, 0, -1) if base % d == 0]

    b8 = _round_up(B, 8)
    tb_all = (1024, 512, 256, 128, 64, 32, 16, 8)
    tb_cands = [
        t for t in tb_all
        if t <= b8 and _round_up(B, t) <= max(int(1.25 * B), b8)
    ]
    if not tb_cands:
        tb_cands = [8]

    for TF in tf_cands:
        n_f = Fp // TF
        osz = out_isz if n_f == 1 else 4  # f32 out when o_ref accumulates
        for TB in tb_cands:
            need = (
                2 * TB * Dp * in_isz      # x tiles (double-buffered)
                + 2 * Dp * TF * in_isz    # w0 tiles
                + 2 * TF * Dp * in_isz    # w1 tiles
                + 2 * Fp * 4              # b0 (untiled)
                + 2 * Dp * 4              # b1
                + 2 * TB * Dp * osz       # out tiles
                + TB * TF * 4             # h working set
                + TB * Dp * 4             # headroom (partials / spills)
            )
            if need <= budget:
                return TB, TF
    return 8, 128  # desperate fallback


def _mlp_kernel(x_ref, w0_ref, b0_ref, w1_ref, b1_ref, o_ref, *, tf, nk):
    # x_ref:  (TB, Dp) bf16   w0_ref: (Dp, TF) bf16   b0_ref: (1, Fp) f32
    # w1_ref: (TF, Dp) bf16   b1_ref: (1, Dp)  f32    o_ref:  (TB, Dp)
    k = pl.program_id(1)

    # fc0 partial for this F-tile; f32 accumulation on the MXU.
    h = jnp.dot(x_ref[...], w0_ref[...], preferred_element_type=jnp.float32)
    if nk == 1:
        h = h + b0_ref[...]
    else:
        off = pl.multiple_of(k * tf, tf)
        h = h + b0_ref[:, pl.ds(off, tf)]

    # Exact GELU (erf form == PyTorch nn.GELU default); elementwise over the
    # hidden dim so it is valid per F-tile.
    h = 0.5 * h * (1.0 + lax.erf(h * jnp.float32(0.7071067811865476)))

    partial = jnp.dot(
        h.astype(w1_ref.dtype), w1_ref[...], preferred_element_type=jnp.float32
    )

    if nk == 1:
        # Single reduction step: write final result directly in o_ref's dtype.
        o_ref[...] = (partial + b1_ref[...]).astype(o_ref.dtype)
    else:
        # Output tile is VMEM-resident across k (constant output block index):
        # accumulate directly into the f32 o_ref — no scratch buffer.
        @pl.when(k == 0)
        def _init():
            o_ref[...] = partial + b1_ref[...]

        @pl.when(k > 0)
        def _accumulate():
            o_ref[...] += partial


def prepare_mlp_params(w0, b0, w1, b1, mxu_dtype=jnp.bfloat16):
    """Pad to lane-dense multiples of 128 and cast to the MXU dtype ONCE,
    outside the per-call hot path.  w0: (D, F) stored (in, out) — i.e. already
    transposed vs PyTorch's (out, in) — b0: (F,), w1: (F, D), b1: (D,)."""
    D, F = w0.shape
    Dp, Fp = _round_up(D, 128), _round_up(F, 128)

    def _padcast(a, pads, dt):
        if any(p for _, p in pads):
            a = jnp.pad(a, pads)
        return a.astype(dt) if a.dtype != dt else a

    w0_p = _padcast(w0, ((0, Dp - D), (0, Fp - F)), mxu_dtype)
    w1_p = _padcast(w1, ((0, Fp - F), (0, Dp - D)), mxu_dtype)
    b0_p = _padcast(b0.reshape(1, F), ((0, 0), (0, Fp - F)), jnp.float32)
    b1_p = _padcast(b1.reshape(1, D), ((0, 0), (0, Dp - D)), jnp.float32)
    return w0_p, b0_p, w1_p, b1_p


@functools.partial(jax.jit, static_argnames=("d0", "d1", "mxu_dtype"))
def mlp_forward(x, w0_p, b0_p, w1_p, b1_p, *, d0, d1, mxu_dtype=jnp.bfloat16):
    """x: (B, d0, d1); params pre-padded/cast via prepare_mlp_params.
    Returns (B, d0, d1) in x.dtype."""
    B = x.shape[0]
    D = d0 * d1
    Dp, Fp = w0_p.shape

    in_isz = jnp.dtype(mxu_dtype).itemsize
    out_isz = jnp.dtype(x.dtype).itemsize

    cap = _vmem_capacity_bytes()
    budget = max(min(int(0.70 * cap), 100 << 20), 32 << 20)

    TB, TF = _select_tiles(B, Dp, Fp, in_isz, out_isz, budget)
    Bp = _round_up(B, TB)
    n_b, n_f = Bp // TB, Fp // TF

    # o_ref is the reduction accumulator when n_f > 1 -> keep it f32 then.
    out_dtype = x.dtype if n_f == 1 else jnp.float32

    # Conditional pad / cast of the activation (no-op when already aligned).
    x_flat = x.reshape(B, D)
    if x_flat.dtype != mxu_dtype:
        x_flat = x_flat.astype(mxu_dtype)
    if Bp != B or Dp != D:
        x_flat = jnp.pad(x_flat, ((0, Bp - B), (0, Dp - D)))

    out_p = pl.pallas_call(
        functools.partial(_mlp_kernel, tf=TF, nk=n_f),
        out_shape=jax.ShapeDtypeStruct((Bp, Dp), out_dtype),
        grid_spec=pltpu.PrefetchScalarGridSpec(
            num_scalar_prefetch=0,
            grid=(n_b, n_f),
            in_specs=[
                pl.BlockSpec((TB, Dp), lambda i, k: (i, 0)),  # x tile
                pl.BlockSpec((Dp, TF), lambda i, k: (0, k)),  # w0 (resident if n_f==1)
                pl.BlockSpec((1, Fp), lambda i, k: (0, 0)),   # b0 (untiled, sliced in-kernel)
                pl.BlockSpec((TF, Dp), lambda i, k: (k, 0)),  # w1 (resident if n_f==1)
                pl.BlockSpec((1, Dp), lambda i, k: (0, 0)),   # b1
            ],
            out_specs=pl.BlockSpec((TB, Dp), lambda i, k: (i, 0)),
        ),
        compiler_params=pltpu.CompilerParams(
            dimension_semantics=("parallel", "arbitrary"),
            vmem_limit_bytes=budget,
        ),
    )(x_flat, w0_p, b0_p, w1_p, b1_p)

    out = out_p
    if Bp != B or Dp != D:
        out = out[:B, :D]
    if out.dtype != x.dtype:
        out = out.astype(x.dtype)
    return out.reshape(B, d0, d1)


def _reference(x, w0, b0, w1, b1, d0, d1):
    B = x.shape[0]
    xf = x.reshape(B, d0 * d1)
    h = xf @ w0 + b0
    h = 0.5 * h * (1.0 + lax.erf(h / jnp.sqrt(2.0)))
    o = h @ w1 + b1
    return o.reshape(B, d0, d1)


if __name__ == "__main__":
    # Small shapes consistent with the module: batch=8, d0=4, d1=8, d_ffn=64.
    B, d0, d1, d_ffn = 8, 4, 8, 64
    D = d0 * d1

    key = jax.random.PRNGKey(0)
    kx, k0, kb0, k1, kb1 = jax.random.split(key, 5)

    x = jax.random.normal(kx, (B, d0, d1), dtype=jnp.float32)
    # Deterministic parameter init, stored as (in, out).
    bound0 = 1.0 / jnp.sqrt(D)
    w0 = jax.random.uniform(k0, (D, d_ffn), jnp.float32, -bound0, bound0)
    b0 = jax.random.uniform(kb0, (d_ffn,), jnp.float32, -bound0, bound0)
    bound1 = 1.0 / jnp.sqrt(d_ffn)
    w1 = jax.random.uniform(k1, (d_ffn, D), jnp.float32, -bound1, bound1)
    b1 = jax.random.uniform(kb1, (D,), jnp.float32, -bound1, bound1)

    # One-time weight padding/cast (outside the per-call hot path).
    w0_p, b0_p, w1_p, b1_p = prepare_mlp_params(w0, b0, w1, b1)

    out = mlp_forward(x, w0_p, b0_p, w1_p, b1_p, d0=d0, d1=d1)
    out = jax.block_until_ready(out)

    ref = _reference(x, w0, b0, w1, b1, d0, d1)
    assert out.shape == (B, d0, d1)
    # Tolerance loosened for bf16 MXU inputs (f32 accumulation); use
    # mxu_dtype=jnp.float32 for tighter parity with PyTorch fp32 Linear.
    assert jnp.allclose(out, ref, atol=5e-2, rtol=5e-2), float(
        jnp.max(jnp.abs(out - ref))
    )
    print("KERNEL_OK")
</pallas_src>

<mosaic_0001>
module attributes {stable_mosaic.version = 11 : i64} {
  func.func @_mlp_kernel(%arg0: i32, %arg1: i32, %arg2: memref<8x128xbf16, #tpu.memory_space<vmem>>, %arg3: memref<128x128xbf16, #tpu.memory_space<vmem>>, %arg4: memref<1x128xf32, #tpu.memory_space<vmem>>, %arg5: memref<128x128xbf16, #tpu.memory_space<vmem>>, %arg6: memref<1x128xf32, #tpu.memory_space<vmem>>, %arg7: memref<8x128xf32, #tpu.memory_space<vmem>>) attributes {dimension_semantics = [#tpu.dimension_semantics<parallel>, #tpu.dimension_semantics<arbitrary>], iteration_bounds = array<i64: 1, 1>, scalar_prefetch = 0 : i64, scratch_operands = 0 : i64, tpu.core_type = #tpu.core_type<tc>, window_params = [{transform_indices = @transform_0, window_bounds = array<i64: 8, 128>}, {transform_indices = @transform_1, window_bounds = array<i64: 128, 128>}, {pipeline_mode = #tpu.pipeline_mode<synchronous>, transform_indices = @transform_2, window_bounds = array<i64: 1, 128>}, {transform_indices = @transform_3, window_bounds = array<i64: 128, 128>}, {pipeline_mode = #tpu.pipeline_mode<synchronous>, transform_indices = @transform_4, window_bounds = array<i64: 1, 128>}, {transform_indices = @transform_5, window_bounds = array<i64: 8, 128>}]} {
    %c0 = arith.constant 0 : index
    %c0_0 = arith.constant 0 : index
    %0 = vector.load %arg2[%c0, %c0_0] : memref<8x128xbf16, #tpu.memory_space<vmem>>, vector<8x128xbf16>
    %c0_1 = arith.constant 0 : index
    %c0_2 = arith.constant 0 : index
    %1 = vector.load %arg3[%c0_1, %c0_2] : memref<128x128xbf16, #tpu.memory_space<vmem>>, vector<128x128xbf16>
    %cst = arith.constant dense<0.000000e+00> : vector<8x128xf32>
    %2 = tpu.matmul %0, %1, %cst {dimension_numbers = #tpu.dot_dimension_numbers<[1], [0], [0], [1], [0, 0, 1, 1], [], []>} : vector<8x128xbf16>, vector<128x128xbf16>, vector<8x128xf32> -> vector<8x128xf32>
    %c0_3 = arith.constant 0 : index
    %c0_4 = arith.constant 0 : index
    %3 = vector.load %arg4[%c0_3, %c0_4] : memref<1x128xf32, #tpu.memory_space<vmem>>, vector<1x128xf32>
    %4 = vector.broadcast %3 : vector<1x128xf32> to vector<8x128xf32>
    %5 = arith.addf %2, %4 : vector<8x128xf32>
    %cst_5 = arith.constant 5.000000e-01 : f32
    %6 = vector.broadcast %cst_5 : f32 to vector<8x128xf32>
    %7 = arith.mulf %6, %5 : vector<8x128xf32>
    %cst_6 = arith.constant 0.707106769 : f32
    %8 = vector.broadcast %cst_6 : f32 to vector<8x128xf32>
    %9 = arith.mulf %5, %8 : vector<8x128xf32>
    %10 = math.erf %9 : vector<8x128xf32>
    %cst_7 = arith.constant 1.000000e+00 : f32
    %11 = vector.broadcast %cst_7 : f32 to vector<8x128xf32>
    %12 = arith.addf %11, %10 : vector<8x128xf32>
    %13 = arith.mulf %7, %12 : vector<8x128xf32>
    %14 = arith.truncf %13 : vector<8x128xf32> to vector<8x128xbf16>
    %c0_8 = arith.constant 0 : index
    %c0_9 = arith.constant 0 : index
    %15 = vector.load %arg5[%c0_8, %c0_9] : memref<128x128xbf16, #tpu.memory_space<vmem>>, vector<128x128xbf16>
    %cst_10 = arith.constant dense<0.000000e+00> : vector<8x128xf32>
    %16 = tpu.matmul %14, %15, %cst_10 {dimension_numbers = #tpu.dot_dimension_numbers<[1], [0], [0], [1], [0, 0, 1, 1], [], []>} : vector<8x128xbf16>, vector<128x128xbf16>, vector<8x128xf32> -> vector<8x128xf32>
    %c0_11 = arith.constant 0 : index
    %c0_12 = arith.constant 0 : index
    %17 = vector.load %arg6[%c0_11, %c0_12] : memref<1x128xf32, #tpu.memory_space<vmem>>, vector<1x128xf32>
    %18 = vector.broadcast %17 : vector<1x128xf32> to vector<8x128xf32>
    %19 = arith.addf %16, %18 : vector<8x128xf32>
    %c0_13 = arith.constant 0 : index
    %c0_14 = arith.constant 0 : index
    %20 = vector.load %arg7[%c0_13, %c0_14] : memref<8x128xf32, #tpu.memory_space<vmem>>, vector<8x128xf32>
    tpu.vector_store %arg7[%c0_13, %c0_14], %19 {strides = array<i32>} : memref<8x128xf32, #tpu.memory_space<vmem>>, vector<8x128xf32>,
    return
  }
  func.func @transform_0(%arg0: i32, %arg1: i32) -> (i32, i32) {
    %c0_i32 = arith.constant 0 : i32
    %c0_i32_0 = arith.constant 0 : i32
    return %arg0, %c0_i32 : i32, i32
  }
  func.func @transform_1(%arg0: i32, %arg1: i32) -> (i32, i32) {
    %c0_i32 = arith.constant 0 : i32
    %c0_i32_0 = arith.constant 0 : i32
    return %c0_i32, %arg1 : i32, i32
  }
  func.func @transform_2(%arg0: i32, %arg1: i32) -> (i32, i32) {
    %c0_i32 = arith.constant 0 : i32
    %c0_i32_0 = arith.constant 0 : i32
    %c0_i32_1 = arith.constant 0 : i32
    return %c0_i32, %c0_i32_0 : i32, i32
  }
  func.func @transform_3(%arg0: i32, %arg1: i32) -> (i32, i32) {
    %c0_i32 = arith.constant 0 : i32
    %c0_i32_0 = arith.constant 0 : i32
    return %arg1, %c0_i32 : i32, i32
  }
  func.func @transform_4(%arg0: i32, %arg1: i32) -> (i32, i32) {
    %c0_i32 = arith.constant 0 : i32
    %c0_i32_0 = arith.constant 0 : i32
    %c0_i32_1 = arith.constant 0 : i32
    return %c0_i32, %c0_i32_0 : i32, i32
  }
  func.func @transform_5(%arg0: i32, %arg1: i32) -> (i32, i32) {
    %c0_i32 = arith.constant 0 : i32
    %c0_i32_0 = arith.constant 0 : i32
    return %arg0, %c0_i32 : i32, i32
  }
}

</mosaic_0001>

<llo_original>
// kernel: mlp_forward.1
$region0: #{mlp_forward.1}
  #allocation0 [shape = 'u32[]', space=smem, size = 0x4, offset = 0x4, fixed_abs, tag = 'smem constant byte address 0x4 - core index']
  #allocation1 [shape = 'u32[144,128]{1,0:T(1,128)}', space=vmem, size = 0x12000, scoped, tag = 'internal scratch']
  %s0 = inlined_call_operand.vmem [shape: bf16[8,128], index: 0, kind: input, shape index: {}]
  %s1 = inlined_call_operand.vmem [shape: bf16[128,128], index: 1, kind: input, shape index: {}]
  %s2 = inlined_call_operand.vmem [shape: f32[1,128], index: 2, kind: input, shape index: {}]
  %s3 = inlined_call_operand.hbm [shape: bf16[128,128], index: 3, kind: input, shape index: {}]
  %s4 = inlined_call_operand.vmem [shape: f32[1,128], index: 4, kind: input, shape index: {}]
  %s5 = inlined_call_operand.vmem [shape: f32[8,128], index: 5, kind: output, shape index: {}]
  %s6 = sld [smem:[#allocation0]]
  $region34: #{mlp_forward.1} parent=0
    _
  %s8 = ssub.s32 1, %s6
  %s9 = scalar_select 0, %s8, %s6
  $region1: #{mlp_forward.1} parent=0
    #allocation2 [shape = 'u8[32768]{0}', space=vmem, size = 0x8000, scoped, tag = 'input window, operand 3, single buffered']
    #allocation3 [shape = 's32[1]{0}', space=sflag, size = 0x4, scoped, tag = 'scoped memory for mlp_forward.1']
    %10 = vsyncpa [#allocation3], 0
    // Predicated region
    $region2: #{mlp_forward.1} parent=1 // pred_check
      _
    $region3: #{mlp_forward.1} parent=1 // pred_check_branch
      %12 = sbr.rel (0) target = $region5
    $region4: #{mlp_forward.1} parent=1 // pred_region
      _
    $region5: #{mlp_forward.1} parent=1 // pred_fallthru
      _
    // Predicated region
    $region6: #{mlp_forward.1} parent=1 // pred_check
      _
    $region7: #{mlp_forward.1} parent=1 // pred_check_branch
      %14 = sbr.rel (0) target = $region9
    $region8: #{mlp_forward.1} parent=1 // pred_region
      _
    $region9: #{mlp_forward.1} parent=1 // pred_fallthru
      _
    // Predicated region
    $region10: #{mlp_forward.1} parent=1 // pred_check
      _
    $region11: #{mlp_forward.1} parent=1 // pred_check_branch
      %16 = sbr.rel (0) target = $region13
    $region12: #{mlp_forward.1} parent=1 // pred_region
      _
    $region13: #{mlp_forward.1} parent=1 // pred_fallthru
      _
    // Predicated region
    $region14: #{mlp_forward.1} parent=1 // pred_check
      _
    $region15: #{mlp_forward.1} parent=1 // pred_check_branch
      %18 = sbr.rel (0) target = $region17
    $region16: #{mlp_forward.1} parent=1 // pred_region
      %s20 = ssub.s32 1024, 1024
      %21 = vsyncadd [#allocation3], %s20
      %s22 = sshll.u32 [#allocation2], 4
      %s23 = int_to_ptr.vmem [resolvable:$true] %s22
      %28 = dma.hbm_to_vmem [thread:$0]  %s3, 1024, %s23, [#allocation3], 64, 64, 4
    $region17: #{mlp_forward.1} parent=1 // pred_fallthru
      _
    // Predicated region
    $region18: #{mlp_forward.1} parent=1 // pred_check
      _
    $region19: #{mlp_forward.1} parent=1 // pred_check_branch
      %30 = sbr.rel (0) target = $region21
    $region20: #{mlp_forward.1} parent=1 // pred_region
      _
    $region21: #{mlp_forward.1} parent=1 // pred_fallthru
      _
    // Predicated region
    $region22: #{mlp_forward.1} parent=1 // pred_check
      _
    $region23: #{mlp_forward.1} parent=1 // pred_check_branch
      %32 = sbr.rel (0) target = $region25
    $region24: #{mlp_forward.1} parent=1 // pred_region
      %33 = dma.done [#allocation3], 1024
    $region25: #{mlp_forward.1} parent=1 // pred_fallthru
      _
    %v35 = vld [vmem:[%s0] sm:$0xf]
    %v36 = vld [vmem:[%s1] sm:$0xf]
    %v37 = vld [vmem:[%s1 + $0x4] sm:$0xf]
    %v38 = vld [vmem:[%s1 + $0x8] sm:$0xf]
    %v39 = vld [vmem:[%s1 + $0xc] sm:$0xf]
    %v40 = vld [vmem:[%s1 + $0x10] sm:$0xf]
    %v41 = vld [vmem:[%s1 + $0x14] sm:$0xf]
    %v42 = vld [vmem:[%s1 + $0x18] sm:$0xf]
    %v43 = vld [vmem:[%s1 + $0x1c] sm:$0xf]
    %v44 = vld [vmem:[%s1 + $0x20] sm:$0xf]
    %v45 = vld [vmem:[%s1 + $0x24] sm:$0xf]
    %v46 = vld [vmem:[%s1 + $0x28] sm:$0xf]
    %v47 = vld [vmem:[%s1 + $0x2c] sm:$0xf]
    %v48 = vld [vmem:[%s1 + $0x30] sm:$0xf]
    %v49 = vld [vmem:[%s1 + $0x34] sm:$0xf]
    %v50 = vld [vmem:[%s1 + $0x38] sm:$0xf]
    %v51 = vld [vmem:[%s1 + $0x3c] sm:$0xf]
    %v52 = vld [vmem:[%s2] sm:$0x1]
    %v54 = vlaneseq
    %v55 = vshrl.u32 %v54, 7
    %v56 = vsub.s32 0, %v55
    %v57 = vrot.slane %v52, %v56
    %v75 = vunpack.c.l.b16 %v36
    %v76 = vunpack.c.l.b16 %v37
    %v77 = vunpack.c.l.b16 %v38
    %v78 = vunpack.c.l.b16 %v39
    %v79 = vunpack.c.l.b16 %v40
    %v80 = vunpack.c.l.b16 %v41
    %v81 = vunpack.c.l.b16 %v42
    %v82 = vunpack.c.l.b16 %v43
    %v83 = vunpack.c.l.b16 %v44
    %v84 = vunpack.c.l.b16 %v45
    %v85 = vunpack.c.l.b16 %v46
    %v86 = vunpack.c.l.b16 %v47
    %v87 = vunpack.c.l.b16 %v48
    %v88 = vunpack.c.l.b16 %v49
    %v89 = vunpack.c.l.b16 %v50
    %v90 = vunpack.c.l.b16 %v51
    %v91 = vpack.c.b16 %v76, %v75
    %v92 = vpack.c.b16 %v78, %v77
    %v93 = vpack.c.b16 %v80, %v79
    %v94 = vpack.c.b16 %v82, %v81
    %v95 = vpack.c.b16 %v84, %v83
    %v96 = vpack.c.b16 %v86, %v85
    %v97 = vpack.c.b16 %v88, %v87
    %v98 = vpack.c.b16 %v90, %v89
    %107 = vmatprep.subr.bf16.mxu0 0
    %108 = vmatpush1.bf16.msra.mxu0 %v91
    %109 = vmatprep.subr.bf16.mxu0 0
    %110 = vmatpush1.bf16.msra.mxu0 %v92
    %111 = vmatprep.subr.bf16.mxu0 0
    %112 = vmatpush1.bf16.msra.mxu0 %v93
    %113 = vmatprep.subr.bf16.mxu0 0
    %114 = vmatpush1.bf16.msra.mxu0 %v94
    %115 = vmatprep.subr.bf16.mxu0 0
    %116 = vmatpush1.bf16.msra.mxu0 %v95
    %117 = vmatprep.subr.bf16.mxu0 0
    %118 = vmatpush1.bf16.msra.mxu0 %v96
    %119 = vmatprep.subr.bf16.mxu0 0
    %120 = vmatpush1.bf16.msra.mxu0 %v97
    %121 = vmatprep.subr.bf16.mxu0 0
    %122 = vmatpush1.bf16.msra.mxu0 %v98
    %123 = vmatprep.subr.bf16.mxu0 0
    %124 = vmatpush1.bf16.msra.mxu0 0
    %125 = vmatprep.subr.bf16.mxu0 0
    %126 = vmatpush1.bf16.msra.mxu0 0
    %127 = vmatprep.subr.bf16.mxu0 0
    %128 = vmatpush1.bf16.msra.mxu0 0
    %129 = vmatprep.subr.bf16.mxu0 0
    %130 = vmatpush1.bf16.msra.mxu0 0
    %131 = vmatprep.subr.bf16.mxu0 0
    %132 = vmatpush1.bf16.msra.mxu0 0
    %133 = vmatprep.subr.bf16.mxu0 0
    %134 = vmatpush1.bf16.msra.mxu0 0
    %135 = vmatprep.subr.bf16.mxu0 0
    %136 = vmatpush1.bf16.msra.mxu0 0
    %137 = vmatprep.subr.bf16.mxu0 0
    %138 = vmatpush1.bf16.msra.mxu0 0
    %139 = vmatprep.mubr.bf16.mxu0 0
    %140 = vmatmul.mubr.bf16.gmra.mrb[0].mxu0 %v35
    %v141 = vpop.f32.mrb[0].mxu0
    %v142 = vadd.f32 %v57, %v141
    %v143 = vpop.f32.mrb[0].mxu0
    %v144 = vpop.f32.mrb[0].mxu0
    %v145 = vpop.f32.mrb[0].mxu0
    %146 = vdwg.mxu0
    %v147 = vmul.f32 %v142, 0.5
    %v148 = vmul.f32 %v142, 0.70710677
    %v149 = verf.f32.pop %v148
    %v150 = vadd.f32 %v149, 1.0
    %v151 = vmul.f32 %v147, %v150
    %v152 = vpack.c.bf16 %v151, %v151
    %v153 = vld [vmem:[#allocation2] sm:$0xf]
    %v154 = vld [vmem:[#allocation2 + $0x4] sm:$0xf]
    %v155 = vld [vmem:[#allocation2 + $0x8] sm:$0xf]
    %v156 = vld [vmem:[#allocation2 + $0xc] sm:$0xf]
    %v157 = vld [vmem:[#allocation2 + $0x10] sm:$0xf]
    %v158 = vld [vmem:[#allocation2 + $0x14] sm:$0xf]
    %v159 = vld [vmem:[#allocation2 + $0x18] sm:$0xf]
    %v160 = vld [vmem:[#allocation2 + $0x1c] sm:$0xf]
    %v161 = vld [vmem:[#allocation2 + $0x20] sm:$0xf]
    %v162 = vld [vmem:[#allocation2 + $0x24] sm:$0xf]
    %v163 = vld [vmem:[#allocation2 + $0x28] sm:$0xf]
    %v164 = vld [vmem:[#allocation2 + $0x2c] sm:$0xf]
    %v165 = vld [vmem:[#allocation2 + $0x30] sm:$0xf]
    %v166 = vld [vmem:[#allocation2 + $0x34] sm:$0xf]
    %v167 = vld [vmem:[#allocation2 + $0x38] sm:$0xf]
    %v168 = vld [vmem:[#allocation2 + $0x3c] sm:$0xf]
    %v169 = vld [vmem:[%s4] sm:$0x1]
    %v171 = vlaneseq
    %v172 = vshrl.u32 %v171, 7
    %v173 = vsub.s32 0, %v172
    %v174 = vrot.slane %v169, %v173
    %v192 = vunpack.c.l.b16 %v153
    %v193 = vunpack.c.l.b16 %v154
    %v194 = vunpack.c.l.b16 %v155
    %v195 = vunpack.c.l.b16 %v156
    %v196 = vunpack.c.l.b16 %v157
    %v197 = vunpack.c.l.b16 %v158
    %v198 = vunpack.c.l.b16 %v159
    %v199 = vunpack.c.l.b16 %v160
    %v200 = vunpack.c.l.b16 %v161
    %v201 = vunpack.c.l.b16 %v162
    %v202 = vunpack.c.l.b16 %v163
    %v203 = vunpack.c.l.b16 %v164
    %v204 = vunpack.c.l.b16 %v165
    %v205 = vunpack.c.l.b16 %v166
    %v206 = vunpack.c.l.b16 %v167
    %v207 = vunpack.c.l.b16 %v168
    %v208 = vpack.c.b16 %v193, %v192
    %v209 = vpack.c.b16 %v195, %v194
    %v210 = vpack.c.b16 %v197, %v196
    %v211 = vpack.c.b16 %v199, %v198
    %v212 = vpack.c.b16 %v201, %v200
    %v213 = vpack.c.b16 %v203, %v202
    %v214 = vpack.c.b16 %v205, %v204
    %v215 = vpack.c.b16 %v207, %v206
    %224 = vmatprep.subr.bf16.mxu0 0
    %225 = vmatpush1.bf16.msra.mxu0 %v208
    %226 = vmatprep.subr.bf16.mxu0 0
    %227 = vmatpush1.bf16.msra.mxu0 %v209
    %228 = vmatprep.subr.bf16.mxu0 0
    %229 = vmatpush1.bf16.msra.mxu0 %v210
    %230 = vmatprep.subr.bf16.mxu0 0
    %231 = vmatpush1.bf16.msra.mxu0 %v211
    %232 = vmatprep.subr.bf16.mxu0 0
    %233 = vmatpush1.bf16.msra.mxu0 %v212
    %234 = vmatprep.subr.bf16.mxu0 0
    %235 = vmatpush1.bf16.msra.mxu0 %v213
    %236 = vmatprep.subr.bf16.mxu0 0
    %237 = vmatpush1.bf16.msra.mxu0 %v214
    %238 = vmatprep.subr.bf16.mxu0 0
    %239 = vmatpush1.bf16.msra.mxu0 %v215
    %240 = vmatprep.subr.bf16.mxu0 0
    %241 = vmatpush1.bf16.msra.mxu0 0
    %242 = vmatprep.subr.bf16.mxu0 0
    %243 = vmatpush1.bf16.msra.mxu0 0
    %244 = vmatprep.subr.bf16.mxu0 0
    %245 = vmatpush1.bf16.msra.mxu0 0
    %246 = vmatprep.subr.bf16.mxu0 0
    %247 = vmatpush1.bf16.msra.mxu0 0
    %248 = vmatprep.subr.bf16.mxu0 0
    %249 = vmatpush1.bf16.msra.mxu0 0
    %250 = vmatprep.subr.bf16.mxu0 0
    %251 = vmatpush1.bf16.msra.mxu0 0
    %252 = vmatprep.subr.bf16.mxu0 0
    %253 = vmatpush1.bf16.msra.mxu0 0
    %254 = vmatprep.subr.bf16.mxu0 0
    %255 = vmatpush1.bf16.msra.mxu0 0
    %256 = vmatprep.mubr.bf16.mxu0 0
    %257 = vmatmul.mubr.bf16.gmra.mrb[0].mxu0 %v152
    %v258 = vpop.f32.mrb[0].mxu0
    %v259 = vadd.f32 %v174, %v258
    %v260 = vpop.f32.mrb[0].mxu0
    %v261 = vpop.f32.mrb[0].mxu0
    %v262 = vpop.f32.mrb[0].mxu0
    %263 = vdwg.mxu0
    %264 = vst [vmem:[%s5] sm:$0xff] %v259
    // Predicated region
    $region26: #{mlp_forward.1} parent=1 // pred_check
      _
    $region27: #{mlp_forward.1} parent=1 // pred_check_branch
      %266 = sbr.rel (0) target = $region29
    $region28: #{mlp_forward.1} parent=1 // pred_region
      _
    $region29: #{mlp_forward.1} parent=1 // pred_fallthru
      _
    // Predicated region
    $region30: #{mlp_forward.1} parent=1 // pred_check
      _
    $region31: #{mlp_forward.1} parent=1 // pred_check_branch
      %268 = sbr.rel (0) target = $region33
    $region32: #{mlp_forward.1} parent=1 // pred_region
      _
    $region33: #{mlp_forward.1} parent=1 // pred_fallthru
      _
    %269 = vsyncpa [#allocation3], 1

</llo_original>
